<compile_context>
chip_gen: v5e
topology: v5e:2x2
jax: 0.10.0
libtpu: 0.0.40
codegen_flags: <defaults>
</compile_context>

<pallas_src>
import jax
import jax.numpy as jnp
from jax.experimental import pallas as pl
from jax.experimental.pallas import tpu as pltpu

LN_EPS = 1e-5


def _layernorm(x, gamma, beta):
    """Single-pass LayerNorm over the last (lane) axis, biased variance."""
    inv_n = 1.0 / x.shape[-1]
    s1 = jnp.sum(x, axis=-1, keepdims=True)
    s2 = jnp.sum(x * x, axis=-1, keepdims=True)
    mu = s1 * inv_n
    var = s2 * inv_n - mu * mu
    return (x - mu) * jax.lax.rsqrt(var + LN_EPS) * gamma + beta


def critic_kernel(state_ref, action_ref,
                  w1_ref, b1_ref, g1_ref, be1_ref,
                  w2_ref, b2_ref, g2_ref, be2_ref,
                  wa_ref, ba_ref,
                  wq_ref, bq_ref,
                  out_ref):
    x = state_ref[...]          # (TILE_B, lstm_dims)
    a = action_ref[...]         # (TILE_B, n_actions)

    # --- state branch: fc1 -> LN -> relu -> fc2 -> LN ---
    h = jnp.dot(x, w1_ref[...], preferred_element_type=jnp.float32) + b1_ref[...]
    h = _layernorm(h, g1_ref[...], be1_ref[...])
    h = jnp.maximum(h, 0.0)

    s = jnp.dot(h, w2_ref[...], preferred_element_type=jnp.float32) + b2_ref[...]
    s = _layernorm(s, g2_ref[...], be2_ref[...])

    # --- action branch ---
    av = jnp.dot(a, wa_ref[...], preferred_element_type=jnp.float32) + ba_ref[...]
    av = jnp.maximum(av, 0.0)

    # --- combine + q head ---
    sa = jnp.maximum(s + av, 0.0)
    # q head: degenerate (F, 1) matmul replaced by VPU multiply + XLU
    # row-reduce; wq is a (1, fc2_dims) row, bq is (1, 1).
    q = jnp.sum(sa * wq_ref[...], axis=-1, keepdims=True) + bq_ref[...]
    out_ref[...] = q.astype(out_ref.dtype)


def critic_forward(state, action, params, *, tile_b=512):
    """params: dict of pre-transposed weights / biases (all float32)."""
    B, lstm_dims = state.shape
    n_actions = action.shape[-1]

    # Full batch as one block when small; otherwise a multiple-of-8 tile so the
    # (8, 128) layout constraint holds and the grid pipelines HBM traffic.
    tb = B if B <= tile_b else tile_b
    grid = (pl.cdiv(B, tb),)

    def batch_spec(d):
        # Tiled along batch, whole feature dim in the lane axis.
        return pl.BlockSpec((tb, d), lambda i: (i, 0))

    def param_spec(p):
        # Constant index_map -> DMA'd once, VMEM-resident for the whole grid.
        return pl.BlockSpec(p.shape, lambda i: (0, 0))

    args = (
        state, action,
        params["w1"], params["b1"], params["g1"], params["be1"],
        params["w2"], params["b2"], params["g2"], params["be2"],
        params["wa"], params["ba"],
        params["wq"], params["bq"],
    )
    in_specs = [batch_spec(lstm_dims), batch_spec(n_actions)]
    in_specs += [param_spec(p) for p in args[2:]]

    return pl.pallas_call(
        critic_kernel,
        out_shape=jax.ShapeDtypeStruct((B, 1), jnp.float32),
        grid=grid,
        in_specs=in_specs,
        out_specs=batch_spec(1),
        compiler_params=pltpu.CompilerParams(
            dimension_semantics=("parallel",),  # shard batch across TCs on v7x
        ),
    )(*args)


def init_params(key, lstm_dims, fc1_dims, fc2_dims, n_actions):
    """Deterministic synthetic init mirroring the module's parameter shapes.

    PyTorch Linear weight is (out, in); we store the transpose (in, out).
    Biases / LayerNorm params are stored as (1, dims); wq as a (1, fc2) row.
    """
    ks = jax.random.split(key, 8)
    f1 = 1.0 / jnp.sqrt(jnp.float32(fc1_dims))
    f2 = 1.0 / jnp.sqrt(jnp.float32(fc2_dims))
    f3 = 0.003
    fa = 1.0 / jnp.sqrt(jnp.float32(n_actions))  # PyTorch default init bound

    u = lambda k, shape, lim: jax.random.uniform(
        k, shape, jnp.float32, minval=-lim, maxval=lim)

    return {
        "w1": u(ks[0], (lstm_dims, fc1_dims), f1),
        "b1": u(ks[1], (1, fc1_dims), f1),
        "g1": jnp.ones((1, fc1_dims), jnp.float32),
        "be1": jnp.zeros((1, fc1_dims), jnp.float32),
        "w2": u(ks[2], (fc1_dims, fc2_dims), f2),
        "b2": u(ks[3], (1, fc2_dims), f2),
        "g2": jnp.ones((1, fc2_dims), jnp.float32),
        "be2": jnp.zeros((1, fc2_dims), jnp.float32),
        "wa": u(ks[4], (n_actions, fc2_dims), fa),
        "ba": u(ks[5], (1, fc2_dims), fa),
        "wq": u(ks[6], (1, fc2_dims), f3),   # q-head weight as a lane row
        "bq": u(ks[7], (1, 1), f3),
    }


def critic_ref(state, action, p):
    """Pure-JAX reference for correctness checking."""
    def ln(x, g, b):
        mu = jnp.mean(x, axis=-1, keepdims=True)
        var = jnp.mean((x - mu) ** 2, axis=-1, keepdims=True)
        return (x - mu) / jnp.sqrt(var + LN_EPS) * g + b

    h = jax.nn.relu(ln(state @ p["w1"] + p["b1"], p["g1"], p["be1"]))
    s = ln(h @ p["w2"] + p["b2"], p["g2"], p["be2"])
    av = jax.nn.relu(action @ p["wa"] + p["ba"])
    sa = jax.nn.relu(s + av)
    return sa @ p["wq"].T + p["bq"]


if __name__ == "__main__":
    # Small shapes consistent with the module's forward (hidden dims chosen
    # lane-dense at 128; any dims are supported by the kernel).
    B, LSTM_DIMS, FC1_DIMS, FC2_DIMS, N_ACTIONS = 2, 32, 128, 128, 4

    key = jax.random.PRNGKey(0)
    k_state, k_action, k_params, k_big = jax.random.split(key, 4)

    state = jax.random.normal(k_state, (B, LSTM_DIMS), jnp.float32)
    action = jax.random.normal(k_action, (B, N_ACTIONS), jnp.float32)
    params = init_params(k_params, LSTM_DIMS, FC1_DIMS, FC2_DIMS, N_ACTIONS)

    out = jax.block_until_ready(critic_forward(state, action, params))
    ref = critic_ref(state, action, params)
    assert out.shape == (B, 1), out.shape
    assert jnp.allclose(out, ref, atol=1e-5, rtol=1e-4), (out, ref)

    # Exercise the tiled, pipelined path: multi-block grid + partial last tile.
    BB = 260
    ks, ka = jax.random.split(k_big)
    state_b = jax.random.normal(ks, (BB, LSTM_DIMS), jnp.float32)
    action_b = jax.random.normal(ka, (BB, N_ACTIONS), jnp.float32)
    out_b = jax.block_until_ready(
        critic_forward(state_b, action_b, params, tile_b=128))
    ref_b = critic_ref(state_b, action_b, params)
    assert out_b.shape == (BB, 1), out_b.shape
    assert jnp.allclose(out_b, ref_b, atol=1e-5, rtol=1e-4)

    print("KERNEL_OK")
</pallas_src>

<mosaic_0001>
module attributes {stable_mosaic.version = 11 : i64} {
  func.func @critic_kernel(%arg0: i32, %arg1: memref<2x32xf32, #tpu.memory_space<vmem>>, %arg2: memref<2x4xf32, #tpu.memory_space<vmem>>, %arg3: memref<32x128xf32, #tpu.memory_space<vmem>>, %arg4: memref<1x128xf32, #tpu.memory_space<vmem>>, %arg5: memref<1x128xf32, #tpu.memory_space<vmem>>, %arg6: memref<1x128xf32, #tpu.memory_space<vmem>>, %arg7: memref<128x128xf32, #tpu.memory_space<vmem>>, %arg8: memref<1x128xf32, #tpu.memory_space<vmem>>, %arg9: memref<1x128xf32, #tpu.memory_space<vmem>>, %arg10: memref<1x128xf32, #tpu.memory_space<vmem>>, %arg11: memref<4x128xf32, #tpu.memory_space<vmem>>, %arg12: memref<1x128xf32, #tpu.memory_space<vmem>>, %arg13: memref<1x128xf32, #tpu.memory_space<vmem>>, %arg14: memref<1x1xf32, #tpu.memory_space<vmem>>, %arg15: memref<2x1xf32, #tpu.memory_space<vmem>>) attributes {dimension_semantics = [#tpu.dimension_semantics<parallel>], iteration_bounds = array<i64: 1>, scalar_prefetch = 0 : i64, scratch_operands = 0 : i64, tpu.core_type = #tpu.core_type<tc>, window_params = [{transform_indices = @transform_0, window_bounds = array<i64: 2, 32>}, {transform_indices = @transform_1, window_bounds = array<i64: 2, 4>}, {pipeline_mode = #tpu.pipeline_mode<synchronous>, transform_indices = @transform_2, window_bounds = array<i64: 32, 128>}, {pipeline_mode = #tpu.pipeline_mode<synchronous>, transform_indices = @transform_3, window_bounds = array<i64: 1, 128>}, {pipeline_mode = #tpu.pipeline_mode<synchronous>, transform_indices = @transform_4, window_bounds = array<i64: 1, 128>}, {pipeline_mode = #tpu.pipeline_mode<synchronous>, transform_indices = @transform_5, window_bounds = array<i64: 1, 128>}, {pipeline_mode = #tpu.pipeline_mode<synchronous>, transform_indices = @transform_6, window_bounds = array<i64: 128, 128>}, {pipeline_mode = #tpu.pipeline_mode<synchronous>, transform_indices = @transform_7, window_bounds = array<i64: 1, 128>}, {pipeline_mode = #tpu.pipeline_mode<synchronous>, transform_indices = @transform_8, window_bounds = array<i64: 1, 128>}, {pipeline_mode = #tpu.pipeline_mode<synchronous>, transform_indices = @transform_9, window_bounds = array<i64: 1, 128>}, {pipeline_mode = #tpu.pipeline_mode<synchronous>, transform_indices = @transform_10, window_bounds = array<i64: 4, 128>}, {pipeline_mode = #tpu.pipeline_mode<synchronous>, transform_indices = @transform_11, window_bounds = array<i64: 1, 128>}, {pipeline_mode = #tpu.pipeline_mode<synchronous>, transform_indices = @transform_12, window_bounds = array<i64: 1, 128>}, {pipeline_mode = #tpu.pipeline_mode<synchronous>, transform_indices = @transform_13, window_bounds = array<i64: 1, 1>}, {transform_indices = @transform_14, window_bounds = array<i64: 2, 1>}]} {
    %c0 = arith.constant 0 : index
    %c0_0 = arith.constant 0 : index
    %0 = vector.load %arg1[%c0, %c0_0] : memref<2x32xf32, #tpu.memory_space<vmem>>, vector<2x32xf32>
    %c0_1 = arith.constant 0 : index
    %c0_2 = arith.constant 0 : index
    %1 = vector.load %arg2[%c0_1, %c0_2] : memref<2x4xf32, #tpu.memory_space<vmem>>, vector<2x4xf32>
    %c0_3 = arith.constant 0 : index
    %c0_4 = arith.constant 0 : index
    %2 = vector.load %arg3[%c0_3, %c0_4] : memref<32x128xf32, #tpu.memory_space<vmem>>, vector<32x128xf32>
    %cst = arith.constant dense<0.000000e+00> : vector<2x128xf32>
    %3 = tpu.matmul %0, %2, %cst {dimension_numbers = #tpu.dot_dimension_numbers<[1], [0], [0], [1], [0, 0, 1, 1], [], []>} : vector<2x32xf32>, vector<32x128xf32>, vector<2x128xf32> -> vector<2x128xf32>
    %c0_5 = arith.constant 0 : index
    %c0_6 = arith.constant 0 : index
    %4 = vector.load %arg4[%c0_5, %c0_6] : memref<1x128xf32, #tpu.memory_space<vmem>>, vector<1x128xf32>
    %5 = vector.broadcast %4 : vector<1x128xf32> to vector<2x128xf32>
    %6 = arith.addf %3, %5 : vector<2x128xf32>
    %c0_7 = arith.constant 0 : index
    %c0_8 = arith.constant 0 : index
    %7 = vector.load %arg5[%c0_7, %c0_8] : memref<1x128xf32, #tpu.memory_space<vmem>>, vector<1x128xf32>
    %c0_9 = arith.constant 0 : index
    %c0_10 = arith.constant 0 : index
    %8 = vector.load %arg6[%c0_9, %c0_10] : memref<1x128xf32, #tpu.memory_space<vmem>>, vector<1x128xf32>
    %cst_11 = arith.constant dense<0.000000e+00> : vector<2xf32>
    %9 = vector.multi_reduction <add>, %6, %cst_11 [1] : vector<2x128xf32> to vector<2xf32>
    %10 = vector.shape_cast %9 : vector<2xf32> to vector<2x1xf32>
    %11 = arith.mulf %6, %6 : vector<2x128xf32>
    %cst_12 = arith.constant dense<0.000000e+00> : vector<2xf32>
    %12 = vector.multi_reduction <add>, %11, %cst_12 [1] : vector<2x128xf32> to vector<2xf32>
    %13 = vector.shape_cast %12 : vector<2xf32> to vector<2x1xf32>
    %cst_13 = arith.constant 7.812500e-03 : f32
    %14 = vector.broadcast %cst_13 : f32 to vector<2x1xf32>
    %15 = arith.mulf %10, %14 : vector<2x1xf32>
    %cst_14 = arith.constant 7.812500e-03 : f32
    %16 = vector.broadcast %cst_14 : f32 to vector<2x1xf32>
    %17 = arith.mulf %13, %16 : vector<2x1xf32>
    %18 = arith.mulf %15, %15 : vector<2x1xf32>
    %19 = arith.subf %17, %18 : vector<2x1xf32>
    %20 = vector.broadcast %15 : vector<2x1xf32> to vector<2x128xf32>
    %21 = arith.subf %6, %20 : vector<2x128xf32>
    %cst_15 = arith.constant 9.99999974E-6 : f32
    %22 = vector.broadcast %cst_15 : f32 to vector<2x1xf32>
    %23 = arith.addf %19, %22 : vector<2x1xf32>
    %24 = math.rsqrt %23 : vector<2x1xf32>
    %25 = vector.broadcast %24 : vector<2x1xf32> to vector<2x128xf32>
    %26 = arith.mulf %21, %25 : vector<2x128xf32>
    %27 = vector.broadcast %7 : vector<1x128xf32> to vector<2x128xf32>
    %28 = arith.mulf %26, %27 : vector<2x128xf32>
    %29 = vector.broadcast %8 : vector<1x128xf32> to vector<2x128xf32>
    %30 = arith.addf %28, %29 : vector<2x128xf32>
    %cst_16 = arith.constant 0.000000e+00 : f32
    %31 = vector.broadcast %cst_16 : f32 to vector<2x128xf32>
    %32 = arith.maximumf %30, %31 : vector<2x128xf32>
    %c0_17 = arith.constant 0 : index
    %c0_18 = arith.constant 0 : index
    %33 = vector.load %arg7[%c0_17, %c0_18] : memref<128x128xf32, #tpu.memory_space<vmem>>, vector<128x128xf32>
    %cst_19 = arith.constant dense<0.000000e+00> : vector<2x128xf32>
    %34 = tpu.matmul %32, %33, %cst_19 {dimension_numbers = #tpu.dot_dimension_numbers<[1], [0], [0], [1], [0, 0, 1, 1], [], []>} : vector<2x128xf32>, vector<128x128xf32>, vector<2x128xf32> -> vector<2x128xf32>
    %c0_20 = arith.constant 0 : index
    %c0_21 = arith.constant 0 : index
    %35 = vector.load %arg8[%c0_20, %c0_21] : memref<1x128xf32, #tpu.memory_space<vmem>>, vector<1x128xf32>
    %36 = vector.broadcast %35 : vector<1x128xf32> to vector<2x128xf32>
    %37 = arith.addf %34, %36 : vector<2x128xf32>
    %c0_22 = arith.constant 0 : index
    %c0_23 = arith.constant 0 : index
    %38 = vector.load %arg9[%c0_22, %c0_23] : memref<1x128xf32, #tpu.memory_space<vmem>>, vector<1x128xf32>
    %c0_24 = arith.constant 0 : index
    %c0_25 = arith.constant 0 : index
    %39 = vector.load %arg10[%c0_24, %c0_25] : memref<1x128xf32, #tpu.memory_space<vmem>>, vector<1x128xf32>
    %cst_26 = arith.constant dense<0.000000e+00> : vector<2xf32>
    %40 = vector.multi_reduction <add>, %37, %cst_26 [1] : vector<2x128xf32> to vector<2xf32>
    %41 = vector.shape_cast %40 : vector<2xf32> to vector<2x1xf32>
    %42 = arith.mulf %37, %37 : vector<2x128xf32>
    %cst_27 = arith.constant dense<0.000000e+00> : vector<2xf32>
    %43 = vector.multi_reduction <add>, %42, %cst_27 [1] : vector<2x128xf32> to vector<2xf32>
    %44 = vector.shape_cast %43 : vector<2xf32> to vector<2x1xf32>
    %cst_28 = arith.constant 7.812500e-03 : f32
    %45 = vector.broadcast %cst_28 : f32 to vector<2x1xf32>
    %46 = arith.mulf %41, %45 : vector<2x1xf32>
    %cst_29 = arith.constant 7.812500e-03 : f32
    %47 = vector.broadcast %cst_29 : f32 to vector<2x1xf32>
    %48 = arith.mulf %44, %47 : vector<2x1xf32>
    %49 = arith.mulf %46, %46 : vector<2x1xf32>
    %50 = arith.subf %48, %49 : vector<2x1xf32>
    %51 = vector.broadcast %46 : vector<2x1xf32> to vector<2x128xf32>
    %52 = arith.subf %37, %51 : vector<2x128xf32>
    %cst_30 = arith.constant 9.99999974E-6 : f32
    %53 = vector.broadcast %cst_30 : f32 to vector<2x1xf32>
    %54 = arith.addf %50, %53 : vector<2x1xf32>
    %55 = math.rsqrt %54 : vector<2x1xf32>
    %56 = vector.broadcast %55 : vector<2x1xf32> to vector<2x128xf32>
    %57 = arith.mulf %52, %56 : vector<2x128xf32>
    %58 = vector.broadcast %38 : vector<1x128xf32> to vector<2x128xf32>
    %59 = arith.mulf %57, %58 : vector<2x128xf32>
    %60 = vector.broadcast %39 : vector<1x128xf32> to vector<2x128xf32>
    %61 = arith.addf %59, %60 : vector<2x128xf32>
    %c0_31 = arith.constant 0 : index
    %c0_32 = arith.constant 0 : index
    %62 = vector.load %arg11[%c0_31, %c0_32] : memref<4x128xf32, #tpu.memory_space<vmem>>, vector<4x128xf32>
    %cst_33 = arith.constant dense<0.000000e+00> : vector<2x128xf32>
    %63 = tpu.matmul %1, %62, %cst_33 {dimension_numbers = #tpu.dot_dimension_numbers<[1], [0], [0], [1], [0, 0, 1, 1], [], []>} : vector<2x4xf32>, vector<4x128xf32>, vector<2x128xf32> -> vector<2x128xf32>
    %c0_34 = arith.constant 0 : index
    %c0_35 = arith.constant 0 : index
    %64 = vector.load %arg12[%c0_34, %c0_35] : memref<1x128xf32, #tpu.memory_space<vmem>>, vector<1x128xf32>
    %65 = vector.broadcast %64 : vector<1x128xf32> to vector<2x128xf32>
    %66 = arith.addf %63, %65 : vector<2x128xf32>
    %cst_36 = arith.constant 0.000000e+00 : f32
    %67 = vector.broadcast %cst_36 : f32 to vector<2x128xf32>
    %68 = arith.maximumf %66, %67 : vector<2x128xf32>
    %69 = arith.addf %61, %68 : vector<2x128xf32>
    %cst_37 = arith.constant 0.000000e+00 : f32
    %70 = vector.broadcast %cst_37 : f32 to vector<2x128xf32>
    %71 = arith.maximumf %69, %70 : vector<2x128xf32>
    %c0_38 = arith.constant 0 : index
    %c0_39 = arith.constant 0 : index
    %72 = vector.load %arg13[%c0_38, %c0_39] : memref<1x128xf32, #tpu.memory_space<vmem>>, vector<1x128xf32>
    %73 = vector.broadcast %72 : vector<1x128xf32> to vector<2x128xf32>
    %74 = arith.mulf %71, %73 : vector<2x128xf32>
    %cst_40 = arith.constant dense<0.000000e+00> : vector<2xf32>
    %75 = vector.multi_reduction <add>, %74, %cst_40 [1] : vector<2x128xf32> to vector<2xf32>
    %76 = vector.shape_cast %75 : vector<2xf32> to vector<2x1xf32>
    %c0_41 = arith.constant 0 : index
    %c0_42 = arith.constant 0 : index
    %77 = vector.load %arg14[%c0_41, %c0_42] : memref<1x1xf32, #tpu.memory_space<vmem>>, vector<1x1xf32>
    %78 = vector.broadcast %77 : vector<1x1xf32> to vector<2x1xf32>
    %79 = arith.addf %76, %78 : vector<2x1xf32>
    %c0_43 = arith.constant 0 : index
    %c0_44 = arith.constant 0 : index
    %80 = vector.load %arg15[%c0_43, %c0_44] : memref<2x1xf32, #tpu.memory_space<vmem>>, vector<2x1xf32>
    tpu.vector_store %arg15[%c0_43, %c0_44], %79 {strides = array<i32>} : memref<2x1xf32, #tpu.memory_space<vmem>>, vector<2x1xf32>,
    return
  }
  func.func @transform_0(%arg0: i32) -> (i32, i32) {
    %c0_i32 = arith.constant 0 : i32
    %c0_i32_0 = arith.constant 0 : i32
    return %arg0, %c0_i32 : i32, i32
  }
  func.func @transform_1(%arg0: i32) -> (i32, i32) {
    %c0_i32 = arith.constant 0 : i32
    %c0_i32_0 = arith.constant 0 : i32
    return %arg0, %c0_i32 : i32, i32
  }
  func.func @transform_2(%arg0: i32) -> (i32, i32) {
    %c0_i32 = arith.constant 0 : i32
    %c0_i32_0 = arith.constant 0 : i32
    %c0_i32_1 = arith.constant 0 : i32
    return %c0_i32, %c0_i32_0 : i32, i32
  }
  func.func @transform_3(%arg0: i32) -> (i32, i32) {
    %c0_i32 = arith.constant 0 : i32
    %c0_i32_0 = arith.constant 0 : i32
    %c0_i32_1 = arith.constant 0 : i32
    return %c0_i32, %c0_i32_0 : i32, i32
  }
  func.func @transform_4(%arg0: i32) -> (i32, i32) {
    %c0_i32 = arith.constant 0 : i32
    %c0_i32_0 = arith.constant 0 : i32
    %c0_i32_1 = arith.constant 0 : i32
    return %c0_i32, %c0_i32_0 : i32, i32
  }
  func.func @transform_5(%arg0: i32) -> (i32, i32) {
    %c0_i32 = arith.constant 0 : i32
    %c0_i32_0 = arith.constant 0 : i32
    %c0_i32_1 = arith.constant 0 : i32
    return %c0_i32, %c0_i32_0 : i32, i32
  }
  func.func @transform_6(%arg0: i32) -> (i32, i32) {
    %c0_i32 = arith.constant 0 : i32
    %c0_i32_0 = arith.constant 0 : i32
    %c0_i32_1 = arith.constant 0 : i32
    return %c0_i32, %c0_i32_0 : i32, i32
  }
  func.func @transform_7(%arg0: i32) -> (i32, i32) {
    %c0_i32 = arith.constant 0 : i32
    %c0_i32_0 = arith.constant 0 : i32
    %c0_i32_1 = arith.constant 0 : i32
    return %c0_i32, %c0_i32_0 : i32, i32
  }
  func.func @transform_8(%arg0: i32) -> (i32, i32) {
    %c0_i32 = arith.constant 0 : i32
    %c0_i32_0 = arith.constant 0 : i32
    %c0_i32_1 = arith.constant 0 : i32
    return %c0_i32, %c0_i32_0 : i32, i32
  }
  func.func @transform_9(%arg0: i32) -> (i32, i32) {
    %c0_i32 = arith.constant 0 : i32
    %c0_i32_0 = arith.constant 0 : i32
    %c0_i32_1 = arith.constant 0 : i32
    return %c0_i32, %c0_i32_0 : i32, i32
  }
  func.func @transform_10(%arg0: i32) -> (i32, i32) {
    %c0_i32 = arith.constant 0 : i32
    %c0_i32_0 = arith.constant 0 : i32
    %c0_i32_1 = arith.constant 0 : i32
    return %c0_i32, %c0_i32_0 : i32, i32
  }
  func.func @transform_11(%arg0: i32) -> (i32, i32) {
    %c0_i32 = arith.constant 0 : i32
    %c0_i32_0 = arith.constant 0 : i32
    %c0_i32_1 = arith.constant 0 : i32
    return %c0_i32, %c0_i32_0 : i32, i32
  }
  func.func @transform_12(%arg0: i32) -> (i32, i32) {
    %c0_i32 = arith.constant 0 : i32
    %c0_i32_0 = arith.constant 0 : i32
    %c0_i32_1 = arith.constant 0 : i32
    return %c0_i32, %c0_i32_0 : i32, i32
  }
  func.func @transform_13(%arg0: i32) -> (i32, i32) {
    %c0_i32 = arith.constant 0 : i32
    %c0_i32_0 = arith.constant 0 : i32
    %c0_i32_1 = arith.constant 0 : i32
    return %c0_i32, %c0_i32_0 : i32, i32
  }
  func.func @transform_14(%arg0: i32) -> (i32, i32) {
    %c0_i32 = arith.constant 0 : i32
    %c0_i32_0 = arith.constant 0 : i32
    return %arg0, %c0_i32 : i32, i32
  }
}

</mosaic_0001>

<llo_original>
// kernel: tpu_custom_call.1
$region0: #{tpu_custom_call.1}
  #allocation0 [shape = 'u32[]', space=smem, size = 0x4, offset = 0x4, fixed_abs, tag = 'smem constant byte address 0x4 - core index']
  #allocation1 [shape = 'u32[72,128]{1,0:T(1,128)}', space=vmem, size = 0x9000, scoped, tag = 'internal scratch']
  #allocation2 [shape = 'f32[1,1]{1,0:T(1,128)S(1)}', space=vmem, size = 0x200, scoped, tag = 'scoped memory for tpu_custom_call.1']
  %s0 = inlined_call_operand.vmem [shape: f32[2,32], index: 0, kind: input, shape index: {}]
  %s1 = inlined_call_operand.hbm [shape: f32[2,4], index: 1, kind: input, shape index: {}]
  %s2 = inlined_call_operand.hbm [shape: f32[32,128], index: 2, kind: input, shape index: {}]
  %s3 = inlined_call_operand.vmem [shape: f32[1,128], index: 3, kind: input, shape index: {}]
  %s4 = inlined_call_operand.hbm [shape: f32[1,128], index: 4, kind: input, shape index: {}]
  %s5 = inlined_call_operand.hbm [shape: f32[1,128], index: 5, kind: input, shape index: {}]
  %s6 = inlined_call_operand.hbm [shape: f32[128,128], index: 6, kind: input, shape index: {}]
  %s7 = inlined_call_operand.vmem [shape: f32[1,128], index: 7, kind: input, shape index: {}]
  %s8 = inlined_call_operand.vmem [shape: f32[1,128], index: 8, kind: input, shape index: {}]
  %s9 = inlined_call_operand.vmem [shape: f32[1,128], index: 9, kind: input, shape index: {}]
  %s10 = inlined_call_operand.vmem [shape: f32[4,128], index: 10, kind: input, shape index: {}]
  %s11 = inlined_call_operand.vmem [shape: f32[1,128], index: 11, kind: input, shape index: {}]
  %s12 = inlined_call_operand.vmem [shape: f32[1,128], index: 12, kind: input, shape index: {}]
  %s13 = inlined_call_operand.<no memory space> [shape: f32[1,1], index: 13, kind: input, shape index: {}]
  %s14 = inlined_call_operand.vmem [shape: f32[2,1], index: 14, kind: output, shape index: {}]
  %s15 = sld [smem:[#allocation0]]
  $region86: #{tpu_custom_call.1} parent=0
    _
  %s17 = ssub.s32 1, %s15
  %s18 = scalar_select 0, %s17, %s15
  %v19 = vstv %s13
  %20 = vst [vmem:[#allocation2] sm:$0x1] %v19
  $region1: #{tpu_custom_call.1} parent=0
    #allocation3 [shape = 'u8[1024]{0}', space=vmem, size = 0x400, scoped, tag = 'input window, operand 1, single buffered']
    #allocation4 [shape = 's32[1]{0}', space=sflag, size = 0x4, scoped, tag = 'scoped memory for tpu_custom_call.1']
    #allocation5 [shape = 'u8[16384]{0}', space=vmem, size = 0x4000, scoped, tag = 'input window, operand 2, single buffered']
    #allocation6 [shape = 's32[1]{0}', space=sflag, size = 0x4, scoped, tag = 'scoped memory for tpu_custom_call.1']
    #allocation7 [shape = 'u8[512]{0}', space=vmem, size = 0x400, scoped, tag = 'input window, operand 4, single buffered']
    #allocation8 [shape = 'u8[512]{0}', space=vmem, size = 0x400, scoped, tag = 'input window, operand 5, single buffered']
    #allocation9 [shape = 's32[1]{0}', space=sflag, size = 0x4, scoped, tag = 'scoped memory for tpu_custom_call.1']
    #allocation10 [shape = 'u8[65536]{0}', space=vmem, size = 0x10000, scoped, tag = 'input window, operand 6, single buffered']
    %21 = vsyncpa [#allocation4], 0
    %22 = vsyncpa [#allocation6], 0
    %23 = vsyncpa [#allocation9], 0
    // Predicated region
    $region2: #{tpu_custom_call.1} parent=1 // pred_check
      _
    $region3: #{tpu_custom_call.1} parent=1 // pred_check_branch
      %25 = sbr.rel (0) target = $region5
    $region4: #{tpu_custom_call.1} parent=1 // pred_region
      _
    $region5: #{tpu_custom_call.1} parent=1 // pred_fallthru
      _
    // Predicated region
    $region6: #{tpu_custom_call.1} parent=1 // pred_check
      _
    $region7: #{tpu_custom_call.1} parent=1 // pred_check_branch
      %27 = sbr.rel (0) target = $region9
    $region8: #{tpu_custom_call.1} parent=1 // pred_region
      %29 = vsyncadd [#allocation4], 0
      %s31 = sshll.u32 %s1, 4
      %s32 = int_to_ptr.hbm [resolvable:$true] %s31
      %s33 = sshll.u32 [#allocation3], 4
      %s34 = int_to_ptr.vmem [resolvable:$true] %s33
      %36 = dma.hbm_to_vmem [thread:$0]  %s32, 32, %s34, [#allocation4]
    $region9: #{tpu_custom_call.1} parent=1 // pred_fallthru
      _
    // Predicated region
    $region10: #{tpu_custom_call.1} parent=1 // pred_check
      _
    $region11: #{tpu_custom_call.1} parent=1 // pred_check_branch
      %38 = sbr.rel (0) target = $region13
    $region12: #{tpu_custom_call.1} parent=1 // pred_region
      %40 = vsyncadd [#allocation6], 0
      %s41 = sshll.u32 %s2, 4
      %s42 = int_to_ptr.hbm [resolvable:$true] %s41
      %s43 = sshll.u32 [#allocation5], 4
      %s44 = int_to_ptr.vmem [resolvable:$true] %s43
      %49 = dma.hbm_to_vmem [thread:$0]  %s42, 512, %s44, [#allocation6], 128, 128, 8
    $region13: #{tpu_custom_call.1} parent=1 // pred_fallthru
      _
    // Predicated region
    $region14: #{tpu_custom_call.1} parent=1 // pred_check
      _
    $region15: #{tpu_custom_call.1} parent=1 // pred_check_branch
      %51 = sbr.rel (0) target = $region17
    $region16: #{tpu_custom_call.1} parent=1 // pred_region
      _
    $region17: #{tpu_custom_call.1} parent=1 // pred_fallthru
      _
    // Predicated region
    $region18: #{tpu_custom_call.1} parent=1 // pred_check
      _
    $region19: #{tpu_custom_call.1} parent=1 // pred_check_branch
      %53 = sbr.rel (0) target = $region21
    $region20: #{tpu_custom_call.1} parent=1 // pred_region
      %55 = vsyncadd [#allocation6], 0
      %s57 = sshll.u32 %s4, 4
      %s58 = int_to_ptr.hbm [resolvable:$true] %s57
      %s59 = sshll.u32 [#allocation7], 4
      %s60 = int_to_ptr.vmem [resolvable:$true] %s59
      %62 = dma.hbm_to_vmem [thread:$0]  %s58, 16, %s60, [#allocation6]
    $region21: #{tpu_custom_call.1} parent=1 // pred_fallthru
      _
    // Predicated region
    $region22: #{tpu_custom_call.1} parent=1 // pred_check
      _
    $region23: #{tpu_custom_call.1} parent=1 // pred_check_branch
      %64 = sbr.rel (0) target = $region25
    $region24: #{tpu_custom_call.1} parent=1 // pred_region
      %66 = vsyncadd [#allocation9], 0
      %s68 = sshll.u32 %s5, 4
      %s69 = int_to_ptr.hbm [resolvable:$true] %s68
      %s70 = sshll.u32 [#allocation8], 4
      %s71 = int_to_ptr.vmem [resolvable:$true] %s70
      %73 = dma.hbm_to_vmem [thread:$0]  %s69, 16, %s71, [#allocation9]
    $region25: #{tpu_custom_call.1} parent=1 // pred_fallthru
      _
    // Predicated region
    $region26: #{tpu_custom_call.1} parent=1 // pred_check
      _
    $region27: #{tpu_custom_call.1} parent=1 // pred_check_branch
      %75 = sbr.rel (0) target = $region29
    $region28: #{tpu_custom_call.1} parent=1 // pred_region
      %77 = vsyncadd [#allocation9], 0
      %s78 = sshll.u32 %s6, 4
      %s79 = int_to_ptr.hbm [resolvable:$true] %s78
      %s80 = sshll.u32 [#allocation10], 4
      %s81 = int_to_ptr.vmem [resolvable:$true] %s80
      %86 = dma.hbm_to_vmem [thread:$0]  %s79, 2048, %s81, [#allocation9], 128, 128, 8
    $region29: #{tpu_custom_call.1} parent=1 // pred_fallthru
      _
    // Predicated region
    $region30: #{tpu_custom_call.1} parent=1 // pred_check
      _
    $region31: #{tpu_custom_call.1} parent=1 // pred_check_branch
      %88 = sbr.rel (0) target = $region33
    $region32: #{tpu_custom_call.1} parent=1 // pred_region
      _
    $region33: #{tpu_custom_call.1} parent=1 // pred_fallthru
      _
    // Predicated region
    $region34: #{tpu_custom_call.1} parent=1 // pred_check
      _
    $region35: #{tpu_custom_call.1} parent=1 // pred_check_branch
      %90 = sbr.rel (0) target = $region37
    $region36: #{tpu_custom_call.1} parent=1 // pred_region
      _
    $region37: #{tpu_custom_call.1} parent=1 // pred_fallthru
      _
    // Predicated region
    $region38: #{tpu_custom_call.1} parent=1 // pred_check
      _
    $region39: #{tpu_custom_call.1} parent=1 // pred_check_branch
      %92 = sbr.rel (0) target = $region41
    $region40: #{tpu_custom_call.1} parent=1 // pred_region
      _
    $region41: #{tpu_custom_call.1} parent=1 // pred_fallthru
      _
    // Predicated region
    $region42: #{tpu_custom_call.1} parent=1 // pred_check
      _
    $region43: #{tpu_custom_call.1} parent=1 // pred_check_branch
      %94 = sbr.rel (0) target = $region45
    $region44: #{tpu_custom_call.1} parent=1 // pred_region
      _
    $region45: #{tpu_custom_call.1} parent=1 // pred_fallthru
      _
    // Predicated region
    $region46: #{tpu_custom_call.1} parent=1 // pred_check
      _
    $region47: #{tpu_custom_call.1} parent=1 // pred_check_branch
      %96 = sbr.rel (0) target = $region49
    $region48: #{tpu_custom_call.1} parent=1 // pred_region
      _
    $region49: #{tpu_custom_call.1} parent=1 // pred_fallthru
      _
    // Predicated region
    $region50: #{tpu_custom_call.1} parent=1 // pred_check
      _
    $region51: #{tpu_custom_call.1} parent=1 // pred_check_branch
      %98 = sbr.rel (0) target = $region53
    $region52: #{tpu_custom_call.1} parent=1 // pred_region
      _
    $region53: #{tpu_custom_call.1} parent=1 // pred_fallthru
      _
    // Predicated region
    $region54: #{tpu_custom_call.1} parent=1 // pred_check
      _
    $region55: #{tpu_custom_call.1} parent=1 // pred_check_branch
      %100 = sbr.rel (0) target = $region57
    $region56: #{tpu_custom_call.1} parent=1 // pred_region
      _
    $region57: #{tpu_custom_call.1} parent=1 // pred_fallthru
      _
    // Predicated region
    $region58: #{tpu_custom_call.1} parent=1 // pred_check
      _
    $region59: #{tpu_custom_call.1} parent=1 // pred_check_branch
      %102 = sbr.rel (0) target = $region61
    $region60: #{tpu_custom_call.1} parent=1 // pred_region
      %104 = dma.done [#allocation4], 32
    $region61: #{tpu_custom_call.1} parent=1 // pred_fallthru
      _
    // Predicated region
    $region62: #{tpu_custom_call.1} parent=1 // pred_check
      _
    $region63: #{tpu_custom_call.1} parent=1 // pred_check_branch
      %106 = sbr.rel (0) target = $region65
    $region64: #{tpu_custom_call.1} parent=1 // pred_region
      %108 = dma.done [#allocation6], 512
    $region65: #{tpu_custom_call.1} parent=1 // pred_fallthru
      _
    // Predicated region
    $region66: #{tpu_custom_call.1} parent=1 // pred_check
      _
    $region67: #{tpu_custom_call.1} parent=1 // pred_check_branch
      %110 = sbr.rel (0) target = $region69
    $region68: #{tpu_custom_call.1} parent=1 // pred_region
      %112 = dma.done [#allocation6], 16
    $region69: #{tpu_custom_call.1} parent=1 // pred_fallthru
      _
    // Predicated region
    $region70: #{tpu_custom_call.1} parent=1 // pred_check
      _
    $region71: #{tpu_custom_call.1} parent=1 // pred_check_branch
      %114 = sbr.rel (0) target = $region73
    $region72: #{tpu_custom_call.1} parent=1 // pred_region
      %116 = dma.done [#allocation9], 16
    $region73: #{tpu_custom_call.1} parent=1 // pred_fallthru
      _
    // Predicated region
    $region74: #{tpu_custom_call.1} parent=1 // pred_check
      _
    $region75: #{tpu_custom_call.1} parent=1 // pred_check_branch
      %118 = sbr.rel (0) target = $region77
    $region76: #{tpu_custom_call.1} parent=1 // pred_region
      %120 = dma.done [#allocation9], 2048
    $region77: #{tpu_custom_call.1} parent=1 // pred_fallthru
      _
    %v121 = vld [vmem:[%s0] sm:$0x3]
    %v122 = vld [vmem:[#allocation3] sm:$0x3]
    %v123 = vld [vmem:[#allocation5] sm:$0xff]
    %v124 = vld [vmem:[#allocation5 + $0x8] sm:$0xff]
    %v125 = vld [vmem:[#allocation5 + $0x10] sm:$0xff]
    %v126 = vld [vmem:[#allocation5 + $0x18] sm:$0xff]
    %v127 = vld [vmem:[%s3] sm:$0x1]
    %v129 = vperm.slane %v127, 0
    %vm131 = vcmask 261120
    %v133 = vsel %vm131, %v121, 0
    %135 = vmatpush.msra.mxu0 0.0
    %136 = vmatpush.msra.mxu0 0.0
    %137 = vmatpush.msra.mxu0 0.0
    %138 = vmatpush.msra.mxu0 0.0
    %139 = vmatpush.msra.mxu0 0.0
    %140 = vmatpush.msra.mxu0 0.0
    %141 = vmatpush.msra.mxu0 0.0
    %142 = vmatpush.msra.mxu0 0.0
    %143 = vmatpush.msra.mxu0 0.0
    %144 = vmatpush.msra.mxu0 0.0
    %145 = vmatpush.msra.mxu0 0.0
    %146 = vmatpush.msra.mxu0 0.0
    %147 = vmatpush.msra.mxu0 %v126
    %148 = vmatpush.msra.mxu0 %v125
    %149 = vmatpush.msra.mxu0 %v124
    %150 = vmatpush.msra.mxu0 %v123
    %151 = vmatmul.f32.gmra.mxu0 %v133
    %v152 = vpop.f32.mrf.mxu0
    %v153 = vadd.f32 %v129, %v152
    %154 = vdwg.mxu0
    %v155 = vld [vmem:[#allocation7] sm:$0x1]
    %v156 = vld [vmem:[#allocation8] sm:$0x1]
    %vm157 = vcmask 1041408
    %v158 = vsel %vm157, %v153, 0.0
    %159 = vadd.xlane.f32.xlu0 %v158
    %v160 = vpop.xlane.xlu0 %159
    %v161 = vmul.f32 %v153, %v153
    %v162 = vsel %vm157, %v161, 0.0
    %163 = vadd.xlane.f32.xlu0 %v162
    %v164 = vpop.xlane.xlu0 %163
    %v165 = vmul.f32 %v160, 0.0078125
    %v166 = vmul.f32 %v164, 0.0078125
    %v167 = vmul.f32 %v165, %v165
    %v168 = vsub.f32 %v166, %v167
    %v169 = vsub.f32 %v153, %v165
    %v170 = vadd.f32 %v168, 1e-05
    %v171 = vrsqrt.pop %v170
    %v172 = vmul.f32 %v171, %v170
    %v173 = vmul.f32 %v172, %v171
    %v174 = vmul.f32 0.5, %v173
    %v175 = vsub.f32 1.5, %v174
    %v176 = vmul.f32 %v171, %v175
    %vm177 = vweird.f32 %v170
    %vm178 = vweird.f32 %v171
    %vm179 = vmor %vm177, %vm178
    %v180 = vsel %vm179, %v171, %v176
    %v181 = vmul.f32 %v169, %v180
    %v183 = vperm.slane %v155, 0
    %v185 = vmul.f32 %v181, %v183
    %v187 = vperm.slane %v156, 0
    %v189 = vadd.f32 %v185, %v187
    %v190 = vmax.f32 %v189, 0.0
    %v191 = vld [vmem:[#allocation10] sm:$0xff]
    %v192 = vld [vmem:[#allocation10 + $0x8] sm:$0xff]
    %v193 = vld [vmem:[#allocation10 + $0x10] sm:$0xff]
    %v194 = vld [vmem:[#allocation10 + $0x18] sm:$0xff]
    %v195 = vld [vmem:[#allocation10 + $0x20] sm:$0xff]
    %v196 = vld [vmem:[#allocation10 + $0x28] sm:$0xff]
    %v197 = vld [vmem:[#allocation10 + $0x30] sm:$0xff]
    %v198 = vld [vmem:[#allocation10 + $0x38] sm:$0xff]
    %v199 = vld [vmem:[#allocation10 + $0x40] sm:$0xff]
    %v200 = vld [vmem:[#allocation10 + $0x48] sm:$0xff]
    %v201 = vld [vmem:[#allocation10 + $0x50] sm:$0xff]
    %v202 = vld [vmem:[#allocation10 + $0x58] sm:$0xff]
    %v203 = vld [vmem:[#allocation10 + $0x60] sm:$0xff]
    %v204 = vld [vmem:[#allocation10 + $0x68] sm:$0xff]
    %v205 = vld [vmem:[#allocation10 + $0x70] sm:$0xff]
    %v206 = vld [vmem:[#allocation10 + $0x78] sm:$0xff]
    %v207 = vld [vmem:[%s7] sm:$0x1]
    %v209 = vperm.slane %v207, 0
    %211 = vmatpush.msra.mxu0 %v206
    %212 = vmatpush.msra.mxu0 %v205
    %213 = vmatpush.msra.mxu0 %v204
    %214 = vmatpush.msra.mxu0 %v203
    %215 = vmatpush.msra.mxu0 %v202
    %216 = vmatpush.msra.mxu0 %v201
    %217 = vmatpush.msra.mxu0 %v200
    %218 = vmatpush.msra.mxu0 %v199
    %219 = vmatpush.msra.mxu0 %v198
    %220 = vmatpush.msra.mxu0 %v197
    %221 = vmatpush.msra.mxu0 %v196
    %222 = vmatpush.msra.mxu0 %v195
    %223 = vmatpush.msra.mxu0 %v194
    %224 = vmatpush.msra.mxu0 %v193
    %225 = vmatpush.msra.mxu0 %v192
    %226 = vmatpush.msra.mxu0 %v191
    %227 = vmatmul.f32.gmra.mxu0 %v190
    %v228 = vpop.f32.mrf.mxu0
    %v229 = vadd.f32 %v209, %v228
    %230 = vdwg.mxu0
    %v231 = vld [vmem:[%s8] sm:$0x1]
    %v232 = vld [vmem:[%s9] sm:$0x1]
    %v233 = vsel %vm157, %v229, 0.0
    %234 = vadd.xlane.f32.xlu0 %v233
    %v235 = vpop.xlane.xlu0 %234
    %v236 = vmul.f32 %v229, %v229
    %v237 = vsel %vm157, %v236, 0.0
    %238 = vadd.xlane.f32.xlu0 %v237
    %v239 = vpop.xlane.xlu0 %238
    %v240 = vmul.f32 %v235, 0.0078125
    %v241 = vmul.f32 %v239, 0.0078125
    %v242 = vmul.f32 %v240, %v240
    %v243 = vsub.f32 %v241, %v242
    %v244 = vsub.f32 %v229, %v240
    %v245 = vadd.f32 %v243, 1e-05
    %v246 = vrsqrt.pop %v245
    %v247 = vmul.f32 %v246, %v245
    %v248 = vmul.f32 %v247, %v246
    %v249 = vmul.f32 0.5, %v248
    %v250 = vsub.f32 1.5, %v249
    %v251 = vmul.f32 %v246, %v250
    %vm252 = vweird.f32 %v245
    %vm253 = vweird.f32 %v246
    %vm254 = vmor %vm252, %vm253
    %v255 = vsel %vm254, %v246, %v251
    %v256 = vmul.f32 %v244, %v255
    %v258 = vperm.slane %v231, 0
    %v260 = vmul.f32 %v256, %v258
    %v262 = vperm.slane %v232, 0
    %v264 = vadd.f32 %v260, %v262
    %v265 = vld [vmem:[%s10] sm:$0xf]
    %v266 = vld [vmem:[%s11] sm:$0x1]
    %v268 = vperm.slane %v266, 0
    %vm270 = vcmask 31744
    %v272 = vsel %vm270, %v122, 0
    %vm274 = vcmask 1043456
    %v276 = vsel %vm274, %v265, 0
    %278 = vmatpush.msra.mxu0 0.0
    %279 = vmatpush.msra.mxu0 0.0
    %280 = vmatpush.msra.mxu0 0.0
    %281 = vmatpush.msra.mxu0 0.0
    %282 = vmatpush.msra.mxu0 0.0
    %283 = vmatpush.msra.mxu0 0.0
    %284 = vmatpush.msra.mxu0 0.0
    %285 = vmatpush.msra.mxu0 0.0
    %286 = vmatpush.msra.mxu0 0.0
    %287 = vmatpush.msra.mxu0 0.0
    %288 = vmatpush.msra.mxu0 0.0
    %289 = vmatpush.msra.mxu0 0.0
    %290 = vmatpush.msra.mxu0 0.0
    %291 = vmatpush.msra.mxu0 0.0
    %292 = vmatpush.msra.mxu0 0.0
    %293 = vmatpush.msra.mxu0 %v276
    %294 = vmatmul.f32.gmra.mxu0 %v272
    %v295 = vpop.f32.mrf.mxu0
    %v296 = vadd.f32 %v268, %v295
    %297 = vdwg.mxu0
    %v298 = vmax.f32 %v296, 0.0
    %v299 = vadd.f32 %v264, %v298
    %v300 = vmax.f32 %v299, 0.0
    %v301 = vld [vmem:[%s12] sm:$0x1]
    %v303 = vperm.slane %v301, 0
    %v305 = vmul.f32 %v300, %v303
    %v306 = vsel %vm157, %v305, 0.0
    %307 = vadd.xlane.f32.xlu0 %v306
    %v308 = vpop.xlane.xlu0 %307
    %v309 = vld [vmem:[#allocation2] sm:$0x1]
    %v311 = vperm.slane %v309, 0
    %v313 = vadd.f32 %v308, %v311
    %vm314 = vcmask 1024
    %315 = vst.msk [vmem:[%s14] sm:$0x3] %vm314, %v313
    // Predicated region
    $region78: #{tpu_custom_call.1} parent=1 // pred_check
      _
    $region79: #{tpu_custom_call.1} parent=1 // pred_check_branch
      %317 = sbr.rel (0) target = $region81
    $region80: #{tpu_custom_call.1} parent=1 // pred_region
      _
    $region81: #{tpu_custom_call.1} parent=1 // pred_fallthru
      _
    // Predicated region
    $region82: #{tpu_custom_call.1} parent=1 // pred_check
      _
    $region83: #{tpu_custom_call.1} parent=1 // pred_check_branch
      %319 = sbr.rel (0) target = $region85
    $region84: #{tpu_custom_call.1} parent=1 // pred_region
      _
    $region85: #{tpu_custom_call.1} parent=1 // pred_fallthru
      _
    %320 = vsyncpa [#allocation4], 1
    %321 = vsyncpa [#allocation6], 1
    %322 = vsyncpa [#allocation9], 1

</llo_original>
